<compile_context>
chip_gen: v7x
topology: tpu7x:2x2x1
jax: 0.10.0
libtpu: 0.0.40
codegen_flags: <defaults>
</compile_context>

<pallas_src>
import jax
import jax.numpy as jnp
from jax.experimental import pallas as pl
from jax.experimental.pallas import tpu as pltpu


def _label_attn_kernel(w_ref, x_ref, o_ref, m_sc, l_sc, acc_sc):
    # w_ref : (TL, D)    label-query tile (rows of U.weight)
    # x_ref : (1, TN, D) token tile for the current batch element
    # o_ref : (1, TL, D) output tile (resident across the token/reduction axis)
    n_idx = pl.program_id(2)

    @pl.when(n_idx == 0)
    def _init():
        m_sc[...] = jnp.full_like(m_sc, -jnp.inf)
        l_sc[...] = jnp.zeros_like(l_sc)
        acc_sc[...] = jnp.zeros_like(acc_sc)

    w = w_ref[...]          # (TL, D)
    x = x_ref[0]            # (TN, D)

    # Scores: (TL, TN) = W @ x^T, contracting over D (MXU matmul).
    s = jax.lax.dot_general(
        w, x, (((1,), (1,)), ((), ())), preferred_element_type=jnp.float32)

    # Online softmax update over the token axis.
    m_prev = m_sc[...]                                        # (TL, 1)
    m_new = jnp.maximum(m_prev, s.max(axis=-1, keepdims=True))
    corr = jnp.exp(m_prev - m_new)                            # (TL, 1)
    p = jnp.exp(s - m_new)                                    # (TL, TN)

    l_sc[...] = corr * l_sc[...] + p.sum(axis=-1, keepdims=True)
    acc_sc[...] = corr * acc_sc[...] + jnp.dot(
        p.astype(x.dtype), x, preferred_element_type=jnp.float32)
    m_sc[...] = m_new

    @pl.when(n_idx == pl.num_programs(2) - 1)
    def _finalize():
        o_ref[0] = (acc_sc[...] / l_sc[...]).astype(o_ref.dtype)


def _pick_tile(dim, max_tile, align):
    """Largest divisor of `dim` that is <= max_tile and a multiple of `align`,
    or the full dim when it is small enough (full-dim blocks are always legal)."""
    if dim <= max_tile:
        return dim
    for t in range(max_tile, 0, -1):
        if dim % t == 0 and t % align == 0:
            return t
    return dim


def label_wise_attn(x, u_weight, *, max_label_tile=128, max_token_tile=512):
    """Pallas equivalent of LabelWiseAttn.forward.

    Args:
      x        : (B, N, D) activations.
      u_weight : (L, D) label attention weights (nn.Linear weight; bias unused
                 in the PyTorch forward).
    Returns:
      m : (B, L, D)
    """
    B, N, D = x.shape
    L, D2 = u_weight.shape
    assert D == D2, "input_size mismatch between x and U.weight"

    TL = _pick_tile(L, max_label_tile, 8)
    TN = _pick_tile(N, max_token_tile, 8)
    grid = (B, L // TL, N // TN)

    return pl.pallas_call(
        _label_attn_kernel,
        out_shape=jax.ShapeDtypeStruct((B, L, D), x.dtype),
        grid_spec=pltpu.PrefetchScalarGridSpec(
            num_scalar_prefetch=0,
            grid=grid,
            in_specs=[
                # Label-query tile; shared across batch and token axes.
                pl.BlockSpec((TL, D), lambda b, li, ni: (li, 0)),
                # Token tile for batch element b.
                pl.BlockSpec((1, TN, D), lambda b, li, ni: (b, ni, 0)),
            ],
            # Same output block across the token axis -> accumulator pattern.
            out_specs=pl.BlockSpec((1, TL, D), lambda b, li, ni: (b, li, 0)),
            scratch_shapes=[
                pltpu.VMEM((TL, 1), jnp.float32),   # running max
                pltpu.VMEM((TL, 1), jnp.float32),   # running denom
                pltpu.VMEM((TL, D), jnp.float32),   # output accumulator
            ],
        ),
        compiler_params=pltpu.CompilerParams(
            dimension_semantics=("parallel", "parallel", "arbitrary"),
        ),
    )(u_weight, x)


if __name__ == "__main__":
    # Small deterministic shapes consistent with the module:
    #   batch=2, seq (tokens) N=16, input_size D=32, num_classes L=8.
    B, N, D, L = 2, 16, 32, 8

    key = jax.random.PRNGKey(0)
    kx, kw = jax.random.split(key)

    x = jax.random.normal(kx, (B, N, D), dtype=jnp.float32)
    # xavier_uniform_-style init for U.weight (L, D).
    limit = (6.0 / (L + D)) ** 0.5
    u_weight = jax.random.uniform(
        kw, (L, D), minval=-limit, maxval=limit, dtype=jnp.float32)

    out = label_wise_attn(x, u_weight)
    out = jax.block_until_ready(out)

    # Pure-JAX reference of the PyTorch forward.
    att = jnp.einsum("ld,bnd->bln", u_weight, x)
    alpha = jax.nn.softmax(att, axis=-1)
    ref = jnp.einsum("bln,bnd->bld", alpha, x)

    assert out.shape == (B, L, D)
    max_err = float(jnp.max(jnp.abs(out - ref)))
    assert jnp.allclose(out, ref, atol=1e-5, rtol=1e-5), f"max_err={max_err}"

    # TODO(synk): the PyTorch module also caches `self.alpha` as a side effect;
    # only the returned tensor `m` is computed here.
    print("KERNEL_OK")
</pallas_src>

<mosaic_0001>
module attributes {stable_mosaic.version = 11 : i64} {
  func.func @_label_attn_kernel(%arg0: i32, %arg1: i32, %arg2: i32, %arg3: memref<8x32xf32, #tpu.memory_space<vmem>>, %arg4: memref<1x16x32xf32, #tpu.memory_space<vmem>>, %arg5: memref<1x8x32xf32, #tpu.memory_space<vmem>>, %arg6: memref<8x1xf32, #tpu.memory_space<vmem>>, %arg7: memref<8x1xf32, #tpu.memory_space<vmem>>, %arg8: memref<8x32xf32, #tpu.memory_space<vmem>>) attributes {dimension_semantics = [#tpu.dimension_semantics<parallel>, #tpu.dimension_semantics<parallel>, #tpu.dimension_semantics<arbitrary>], iteration_bounds = array<i64: 2, 1, 1>, scalar_prefetch = 0 : i64, scratch_operands = 3 : i64, tpu.core_type = #tpu.core_type<tc>, window_params = [{transform_indices = @transform_0, window_bounds = array<i64: 8, 32>}, {transform_indices = @transform_1, window_bounds = array<i64: 1, 16, 32>}, {transform_indices = @transform_2, window_bounds = array<i64: 1, 8, 32>}]} {
    %c0_i32 = arith.constant 0 : i32
    %0 = arith.cmpi eq, %arg2, %c0_i32 : i32
    %1 = arith.extui %0 : i1 to i32
    %c0_i32_0 = arith.constant 0 : i32
    %2 = arith.cmpi ne, %1, %c0_i32_0 : i32
    scf.if %2 {
      %cst_22 = arith.constant 0xFF800000 : f32
      %32 = vector.broadcast %cst_22 : f32 to vector<8x1xf32>
      %c0_23 = arith.constant 0 : index
      %c0_24 = arith.constant 0 : index
      %33 = vector.load %arg6[%c0_23, %c0_24] : memref<8x1xf32, #tpu.memory_space<vmem>>, vector<8x1xf32>
      tpu.vector_store %arg6[%c0_23, %c0_24], %32 {strides = array<i32>} : memref<8x1xf32, #tpu.memory_space<vmem>>, vector<8x1xf32>,
      %cst_25 = arith.constant 0.000000e+00 : f32
      %34 = vector.broadcast %cst_25 : f32 to vector<8x1xf32>
      %c0_26 = arith.constant 0 : index
      %c0_27 = arith.constant 0 : index
      %35 = vector.load %arg7[%c0_26, %c0_27] : memref<8x1xf32, #tpu.memory_space<vmem>>, vector<8x1xf32>
      tpu.vector_store %arg7[%c0_26, %c0_27], %34 {strides = array<i32>} : memref<8x1xf32, #tpu.memory_space<vmem>>, vector<8x1xf32>,
      %cst_28 = arith.constant 0.000000e+00 : f32
      %36 = vector.broadcast %cst_28 : f32 to vector<8x32xf32>
      %c0_29 = arith.constant 0 : index
      %c0_30 = arith.constant 0 : index
      %37 = vector.load %arg8[%c0_29, %c0_30] : memref<8x32xf32, #tpu.memory_space<vmem>>, vector<8x32xf32>
      tpu.vector_store %arg8[%c0_29, %c0_30], %36 {strides = array<i32>} : memref<8x32xf32, #tpu.memory_space<vmem>>, vector<8x32xf32>,
    } else {
    }
    %c0 = arith.constant 0 : index
    %c0_1 = arith.constant 0 : index
    %3 = vector.load %arg3[%c0, %c0_1] : memref<8x32xf32, #tpu.memory_space<vmem>>, vector<8x32xf32>
    %c0_2 = arith.constant 0 : index
    %c0_3 = arith.constant 0 : index
    %c0_4 = arith.constant 0 : index
    %4 = vector.load %arg4[%c0_2, %c0_3, %c0_4] : memref<1x16x32xf32, #tpu.memory_space<vmem>>, vector<1x16x32xf32>
    %5 = vector.shape_cast %4 : vector<1x16x32xf32> to vector<16x32xf32>
    %cst = arith.constant dense<0.000000e+00> : vector<8x16xf32>
    %6 = tpu.matmul %3, %5, %cst {dimension_numbers = #tpu.dot_dimension_numbers<[1], [1], [0], [0], [0, 0, 1, 0], [], []>} : vector<8x32xf32>, vector<16x32xf32>, vector<8x16xf32> -> vector<8x16xf32>
    %c0_5 = arith.constant 0 : index
    %c0_6 = arith.constant 0 : index
    %7 = vector.load %arg6[%c0_5, %c0_6] : memref<8x1xf32, #tpu.memory_space<vmem>>, vector<8x1xf32>
    %cst_7 = arith.constant dense<0xFF800000> : vector<8xf32>
    %8 = vector.multi_reduction <maximumf>, %6, %cst_7 [1] : vector<8x16xf32> to vector<8xf32>
    %9 = vector.shape_cast %8 : vector<8xf32> to vector<8x1xf32>
    %10 = arith.maximumf %7, %9 : vector<8x1xf32>
    %11 = arith.subf %7, %10 : vector<8x1xf32>
    %12 = math.exp %11 : vector<8x1xf32>
    %13 = vector.broadcast %10 : vector<8x1xf32> to vector<8x16xf32>
    %14 = arith.subf %6, %13 : vector<8x16xf32>
    %15 = math.exp %14 : vector<8x16xf32>
    %c0_8 = arith.constant 0 : index
    %c0_9 = arith.constant 0 : index
    %16 = vector.load %arg7[%c0_8, %c0_9] : memref<8x1xf32, #tpu.memory_space<vmem>>, vector<8x1xf32>
    %17 = arith.mulf %12, %16 : vector<8x1xf32>
    %cst_10 = arith.constant dense<0.000000e+00> : vector<8xf32>
    %18 = vector.multi_reduction <add>, %15, %cst_10 [1] : vector<8x16xf32> to vector<8xf32>
    %19 = vector.shape_cast %18 : vector<8xf32> to vector<8x1xf32>
    %20 = arith.addf %17, %19 : vector<8x1xf32>
    %c0_11 = arith.constant 0 : index
    %c0_12 = arith.constant 0 : index
    %21 = vector.load %arg7[%c0_11, %c0_12] : memref<8x1xf32, #tpu.memory_space<vmem>>, vector<8x1xf32>
    tpu.vector_store %arg7[%c0_11, %c0_12], %20 {strides = array<i32>} : memref<8x1xf32, #tpu.memory_space<vmem>>, vector<8x1xf32>,
    %c0_13 = arith.constant 0 : index
    %c0_14 = arith.constant 0 : index
    %22 = vector.load %arg8[%c0_13, %c0_14] : memref<8x32xf32, #tpu.memory_space<vmem>>, vector<8x32xf32>
    %23 = vector.broadcast %12 : vector<8x1xf32> to vector<8x32xf32>
    %24 = arith.mulf %23, %22 : vector<8x32xf32>
    %cst_15 = arith.constant dense<0.000000e+00> : vector<8x32xf32>
    %25 = tpu.matmul %15, %5, %cst_15 {dimension_numbers = #tpu.dot_dimension_numbers<[1], [0], [0], [1], [0, 0, 1, 1], [], []>} : vector<8x16xf32>, vector<16x32xf32>, vector<8x32xf32> -> vector<8x32xf32>
    %26 = arith.addf %24, %25 : vector<8x32xf32>
    %c0_16 = arith.constant 0 : index
    %c0_17 = arith.constant 0 : index
    %27 = vector.load %arg8[%c0_16, %c0_17] : memref<8x32xf32, #tpu.memory_space<vmem>>, vector<8x32xf32>
    tpu.vector_store %arg8[%c0_16, %c0_17], %26 {strides = array<i32>} : memref<8x32xf32, #tpu.memory_space<vmem>>, vector<8x32xf32>,
    %c0_18 = arith.constant 0 : index
    %c0_19 = arith.constant 0 : index
    %28 = vector.load %arg6[%c0_18, %c0_19] : memref<8x1xf32, #tpu.memory_space<vmem>>, vector<8x1xf32>
    tpu.vector_store %arg6[%c0_18, %c0_19], %10 {strides = array<i32>} : memref<8x1xf32, #tpu.memory_space<vmem>>, vector<8x1xf32>,
    %c0_i32_20 = arith.constant 0 : i32
    %29 = arith.cmpi eq, %arg2, %c0_i32_20 : i32
    %30 = arith.extui %29 : i1 to i32
    %c0_i32_21 = arith.constant 0 : i32
    %31 = arith.cmpi ne, %30, %c0_i32_21 : i32
    scf.if %31 {
      %c0_22 = arith.constant 0 : index
      %c0_23 = arith.constant 0 : index
      %32 = vector.load %arg8[%c0_22, %c0_23] : memref<8x32xf32, #tpu.memory_space<vmem>>, vector<8x32xf32>
      %c0_24 = arith.constant 0 : index
      %c0_25 = arith.constant 0 : index
      %33 = vector.load %arg7[%c0_24, %c0_25] : memref<8x1xf32, #tpu.memory_space<vmem>>, vector<8x1xf32>
      %34 = vector.broadcast %33 : vector<8x1xf32> to vector<8x32xf32>
      %35 = arith.divf %32, %34 : vector<8x32xf32>
      %c0_26 = arith.constant 0 : index
      %c0_27 = arith.constant 0 : index
      %c0_28 = arith.constant 0 : index
      %36 = vector.load %arg5[%c0_26, %c0_27, %c0_28] : memref<1x8x32xf32, #tpu.memory_space<vmem>>, vector<1x8x32xf32>
      %37 = vector.shape_cast %36 : vector<1x8x32xf32> to vector<8x32xf32>
      %38 = vector.shape_cast %35 : vector<8x32xf32> to vector<1x8x32xf32>
      tpu.vector_store %arg5[%c0_26, %c0_27, %c0_28], %38 {strides = array<i32>} : memref<1x8x32xf32, #tpu.memory_space<vmem>>, vector<1x8x32xf32>,
    } else {
    }
    return
  }
  func.func @transform_0(%arg0: i32, %arg1: i32, %arg2: i32) -> (i32, i32) {
    %c0_i32 = arith.constant 0 : i32
    %c0_i32_0 = arith.constant 0 : i32
    return %arg1, %c0_i32 : i32, i32
  }
  func.func @transform_1(%arg0: i32, %arg1: i32, %arg2: i32) -> (i32, i32, i32) {
    %c0_i32 = arith.constant 0 : i32
    %c0_i32_0 = arith.constant 0 : i32
    return %arg0, %arg2, %c0_i32 : i32, i32, i32
  }
  func.func @transform_2(%arg0: i32, %arg1: i32, %arg2: i32) -> (i32, i32, i32) {
    %c0_i32 = arith.constant 0 : i32
    %c0_i32_0 = arith.constant 0 : i32
    return %arg0, %arg1, %c0_i32 : i32, i32, i32
  }
}

</mosaic_0001>

<llo_original>
// kernel: tpu_custom_call.1
$region0: #{tpu_custom_call.1}
  #allocation0 [shape = 'u32[]', space=smem, size = 0x4, offset = 0x4, fixed_abs, tag = 'smem constant byte address 0x4 - core index']
  #allocation1 [shape = 'u32[144,128]{1,0:T(1,128)}', space=vmem, size = 0x12000, scoped, tag = 'internal scratch']
  #allocation2 [shape = 'f32[8,1]{1,0:T(8,128)}', space=vmem, size = 0x1000, scoped, tag = 'scratch operand']
  #allocation3 [shape = 'f32[8,1]{1,0:T(8,128)}', space=vmem, size = 0x1000, scoped, tag = 'scratch operand']
  #allocation4 [shape = 'f32[8,32]{1,0:T(8,128)}', space=vmem, size = 0x1000, scoped, tag = 'scratch operand']
  %s0 = inlined_call_operand.hbm [shape: f32[8,32], index: 0, kind: input, shape index: {}]
  %s1 = inlined_call_operand.hbm [shape: f32[2,16,32], index: 1, kind: input, shape index: {}]
  %s2 = inlined_call_operand.hbm [shape: f32[2,8,32], index: 2, kind: output, shape index: {}]
  %s3 = sld [smem:[#allocation0]]
  $region57: #{tpu_custom_call.1} parent=0
    _
  %s5 = ssub.s32 1, %s3
  %s6 = scalar_select 0, %s5, %s3
  $region1: #{tpu_custom_call.1} parent=0
    #allocation5 [shape = 'u8[4096]{0}', space=vmem, size = 0x1000, scoped, tag = 'input window, operand 0, single buffered']
    #allocation6 [shape = 's32[2]{0}', space=sflag, size = 0x8, scoped, tag = 'scoped memory for tpu_custom_call.1']
    #allocation7 [shape = 's32[2]{0}', space=sflag, size = 0x8, scoped, tag = 'scoped memory for tpu_custom_call.1']
    #allocation8 [shape = 'u8[16384]{0}', space=vmem, size = 0x4000, scoped, tag = 'input window, operand 1']
    #allocation9 [shape = 's32[2]{0}', space=sflag, size = 0x8, scoped, tag = 'scoped memory for tpu_custom_call.1']
    #allocation10 [shape = 'u8[8192]{0}', space=vmem, size = 0x2000, scoped, tag = 'output window, operand 0']
    %7 = vsyncpa [#allocation6], 0
    %8 = vsyncpa [#allocation9], 0
    %s9 = scalar_lea.sflag [#allocation9], 1
    %10 = vsyncpa %s9, 0
    %11 = vsyncpa [#allocation7], 0
    %s12 = scalar_lea.sflag [#allocation7], 1
    %13 = vsyncpa %s12, 0
    loop: start=0, step=1, limit=4
    $region2: #{tpu_custom_call.1} parent=1 // loop_pre_header
      _
    $region3: #{tpu_custom_call.1} parent=1 // loop_header
      %s15 = sphi 0, %s19
      %p16 = scmp.ge.s32.totalorder %s15, 4
      %s22 = sphi 0, %s41
      %s23 = sphi 0, %s37
      %s24 = sphi 0, %s33
      %s25 = sphi 0, %s22
      %s26 = sphi 0, %s23
      %s27 = sphi 0, %s24
      %s28 = sphi 0, %s25
      %s29 = sphi 0, %s26
      %s30 = sphi 0, %s27
      %s44 = sphi 0, %s46
      %s47 = sphi 0, %s44
      %s48 = sphi 0, %s47
      %s64 = sphi 0, %s48
      %s72 = sphi 0, %s74
      %s75 = sphi 0, %s72
      %s76 = sphi 0, %s75
      %s92 = sphi 0, %s76
      %s100 = sphi 0, %s102
      %s103 = sphi 0, %s100
      %s104 = sphi 0, %s103
      %s120 = sphi 0, %s104
    $region4: #{tpu_custom_call.1} parent=1 // loop_header_branch
      %18 = sbr.rel (%p16) target = $region8
    $region5: #{tpu_custom_call.1} parent=1 // loop_body
      %s20 = ssub.s32 %s15, 1
      %s21 = ssub.s32 %s15, 2
      %s31 = sadd.s32 1, %s24
      %p32 = scmp.ge.s32.totalorder %s31, 1
      %s33 = scalar_select %p32, 0, %s31
      %s34 = sadd.s32 1, %s23
      %s35 = scalar_select %p32, %s34, %s23
      %p36 = scmp.ge.s32.totalorder %s35, 1
      %s37 = scalar_select %p36, 0, %s35
      %s38 = sadd.s32 1, %s22
      %s39 = scalar_select %p36, %s38, %s22
      %p40 = scmp.ge.s32.totalorder %s39, 2
      %s41 = scalar_select %p40, 0, %s39
      %s42 = ssub.s32 %s23, %s37
      %p43 = scmp.eq.s32.totalorder %s42, 0
      %s45 = sadd.s32 %s44, 1
      %s46 = scalar_select %p43, %s44, %s45
      %p49 = pneg %p43
      %p50 = scmp.eq.s32.totalorder %s15, 1
      %p51 = por %p49, %p50
      %p52 = scmp.ne.s32.totalorder %s44, %s47
      %p53 = scmp.eq.s32.totalorder %s15, 0
      %p54 = por %p52, %p53
      %p55 = scmp.ne.s32.totalorder %s44, %s47
      %p56 = scmp.eq.s32.totalorder %s20, 1
      %p57 = por %p55, %p56
      %p58 = scmp.ne.s32.totalorder %s47, %s48
      %p59 = scmp.eq.s32.totalorder %s20, 0
      %p60 = por %p58, %p59
      %p61 = scmp.ne.s32.totalorder %s47, %s48
      %p62 = scmp.eq.s32.totalorder %s21, 1
      %p63 = por %p61, %p62
      %p65 = scmp.ne.s32.totalorder %s48, %s64
      %p66 = scmp.eq.s32.totalorder %s21, 0
      %p67 = por %p65, %p66
      %s68 = ssub.s32 %s22, %s41
      %s69 = ssub.s32 %s24, %s33
      %s70 = sor.u32 %s68, %s69
      %p71 = scmp.eq.s32.totalorder %s70, 0
      %s73 = sadd.s32 %s72, 1
      %s74 = scalar_select %p71, %s72, %s73
      %p77 = pneg %p71
      %p78 = scmp.eq.s32.totalorder %s15, 1
      %p79 = por %p77, %p78
      %p80 = scmp.ne.s32.totalorder %s72, %s75
      %p81 = scmp.eq.s32.totalorder %s15, 0
      %p82 = por %p80, %p81
      %p83 = scmp.ne.s32.totalorder %s72, %s75
      %p84 = scmp.eq.s32.totalorder %s20, 1
      %p85 = por %p83, %p84
      %p86 = scmp.ne.s32.totalorder %s75, %s76
      %p87 = scmp.eq.s32.totalorder %s20, 0
      %p88 = por %p86, %p87
      %p89 = scmp.ne.s32.totalorder %s75, %s76
      %p90 = scmp.eq.s32.totalorder %s21, 1
      %p91 = por %p89, %p90
      %p93 = scmp.ne.s32.totalorder %s76, %s92
      %p94 = scmp.eq.s32.totalorder %s21, 0
      %p95 = por %p93, %p94
      %s96 = ssub.s32 %s22, %s41
      %s97 = ssub.s32 %s23, %s37
      %s98 = sor.u32 %s96, %s97
      %p99 = scmp.eq.s32.totalorder %s98, 0
      %s101 = sadd.s32 %s100, 1
      %s102 = scalar_select %p99, %s100, %s101
      %p105 = pneg %p99
      %p106 = scmp.eq.s32.totalorder %s15, 1
      %p107 = por %p105, %p106
      %p108 = scmp.ne.s32.totalorder %s100, %s103
      %p109 = scmp.eq.s32.totalorder %s15, 0
      %p110 = por %p108, %p109
      %p111 = scmp.ne.s32.totalorder %s100, %s103
      %p112 = scmp.eq.s32.totalorder %s20, 1
      %p113 = por %p111, %p112
      %p114 = scmp.ne.s32.totalorder %s103, %s104
      %p115 = scmp.eq.s32.totalorder %s20, 0
      %p116 = por %p114, %p115
      %p117 = scmp.ne.s32.totalorder %s103, %s104
      %p118 = scmp.eq.s32.totalorder %s21, 1
      %p119 = por %p117, %p118
      %p121 = scmp.ne.s32.totalorder %s104, %s120
      %p122 = scmp.eq.s32.totalorder %s21, 0
      %p123 = por %p121, %p122
      %p124 = scmp.le.s32.totalorder 1, %s15
      %p125 = scmp.lt.s32.totalorder %s15, 3
      %p126 = pnand %p124, %p125
      %p127 = pneg %p126
      // Predicated region
      $region9: #{tpu_custom_call.1} parent=5 // pred_check
        _
      $region10: #{tpu_custom_call.1} parent=5 // pred_check_branch
        %129 = sbr.rel (%p126) target = $region12
      $region11: #{tpu_custom_call.1} parent=5 // pred_region
        %s130 = ssub.s32 %s15, 1
        // Predicated region
        $region13: #{tpu_custom_call.1} parent=11 // pred_check
          %p131 = pneg %p60
        $region14: #{tpu_custom_call.1} parent=11 // pred_check_branch
          %133 = sbr.rel (%p131) target = $region16
        $region15: #{tpu_custom_call.1} parent=11 // pred_region
          %s135 = ssub.s32 128, 128
          %136 = vsyncadd [#allocation6], %s135
          %s137 = smul.addr %s26, 128
          %s138 = scalar_lea.hbm %s0, %s137
          %s140 = sshll.u32 [#allocation5], 4
          %s141 = int_to_ptr.vmem [resolvable:$true] %s140
          %143 = dma.hbm_to_vmem [thread:$0]  %s138, 128, %s141, [#allocation6]
        $region16: #{tpu_custom_call.1} parent=11 // pred_fallthru
          _
      $region12: #{tpu_custom_call.1} parent=5 // pred_fallthru
        _
      %p144 = scmp.lt.s32.totalorder %s15, 2
      // Predicated region
      $region17: #{tpu_custom_call.1} parent=5 // pred_check
        %p145 = pneg %p144
      $region18: #{tpu_custom_call.1} parent=5 // pred_check_branch
        %147 = sbr.rel (%p145) target = $region20
      $region19: #{tpu_custom_call.1} parent=5 // pred_region
        // Predicated region
        $region21: #{tpu_custom_call.1} parent=19 // pred_check
          %p148 = pneg %p82
        $region22: #{tpu_custom_call.1} parent=19 // pred_check_branch
          %150 = sbr.rel (%p148) target = $region24
        $region23: #{tpu_custom_call.1} parent=19 // pred_region
          %s151 = sand.u32 %s72, 1
          %s152 = scalar_lea.sflag [#allocation9], %s151
          %s153 = sand.u32 %s72, 1
          %s154 = smul.addr %s153, 16
          %s155 = scalar_lea.vmem [#allocation8], %s154
          %s156 = smul.u32 2, %s24
          %s158 = ssub.s32 256, 256
          %159 = vsyncadd %s152, %s158
          %s160 = smul.addr %s22, 2
          %s161 = sadd.s32 %s156, %s160
          %s162 = smul.addr %s161, 128
          %s163 = scalar_lea.hbm %s1, %s162
          %s164 = sshll.u32 %s155, 4
          %s165 = int_to_ptr.vmem [resolvable:$true] %s164
          %170 = dma.hbm_to_vmem [thread:$0]  %s163, 256, %s165, %s152, 128, 128, 8
        $region24: #{tpu_custom_call.1} parent=19 // pred_fallthru
          _
      $region20: #{tpu_custom_call.1} parent=5 // pred_fallthru
        _
      %p171 = scmp.le.s32.totalorder 1, %s15
      %p172 = scmp.lt.s32.totalorder %s15, 3
      %p173 = pnand %p171, %p172
      %p174 = pneg %p173
      // Predicated region
      $region25: #{tpu_custom_call.1} parent=5 // pred_check
        _
      $region26: #{tpu_custom_call.1} parent=5 // pred_check_branch
        %176 = sbr.rel (%p173) target = $region28
      $region27: #{tpu_custom_call.1} parent=5 // pred_region
        %s177 = ssub.s32 %s15, 1
        // Predicated region
        $region29: #{tpu_custom_call.1} parent=27 // pred_check
          %p178 = pneg %p60
        $region30: #{tpu_custom_call.1} parent=27 // pred_check_branch
          %180 = sbr.rel (%p178) target = $region32
        $region31: #{tpu_custom_call.1} parent=27 // pred_region
          %181 = dma.done [#allocation6], 128
        $region32: #{tpu_custom_call.1} parent=27 // pred_fallthru
          _
        %s182 = sand.u32 %s75, 1
        %s183 = scalar_lea.sflag [#allocation9], %s182
        %s184 = sand.u32 %s75, 1
        %s185 = smul.addr %s184, 16
        %s186 = scalar_lea.vmem [#allocation8], %s185
        // Predicated region
        $region33: #{tpu_custom_call.1} parent=27 // pred_check
          %p187 = pneg %p88
        $region34: #{tpu_custom_call.1} parent=27 // pred_check_branch
          %189 = sbr.rel (%p187) target = $region36
        $region35: #{tpu_custom_call.1} parent=27 // pred_region
          %190 = dma.done %s183, 256
        $region36: #{tpu_custom_call.1} parent=27 // pred_fallthru
          _
        %p191 = pneg %p60
        %p192 = pneg %p57
        %s193 = sand.u32 %s75, 1
        %s194 = scalar_lea.sflag [#allocation9], %s193
        %s195 = sand.u32 %s75, 1
        %s196 = smul.addr %s195, 16
        %s197 = scalar_lea.vmem [#allocation8], %s196
        %p198 = pneg %p88
        %p199 = pneg %p85
        %p200 = pneg %p116
        %p201 = pneg %p113
        %s202 = sand.u32 %s103, 1
        %s203 = scalar_lea.sflag [#allocation7], %s202
        %s204 = sand.u32 %s103, 1
        %s205 = smul.addr %s204, 8
        %s206 = scalar_lea.vmem [#allocation10], %s205
        %s207 = smul.u32 2, %s27
        %p208 = scmp.eq.s32.totalorder %s27, 0
        // Predicated region
        $region37: #{tpu_custom_call.1} parent=27 // pred_check
          %p209 = pneg %p208
        $region38: #{tpu_custom_call.1} parent=27 // pred_check_branch
          %211 = sbr.rel (%p209) target = $region40
        $region39: #{tpu_custom_call.1} parent=27 // pred_region
          %vm212 = vcmask 7168
          %213 = vst.msk [vmem:[#allocation2] sm:$0xff] %vm212, -inf
          %214 = vst.msk [vmem:[#allocation3] sm:$0xff] %vm212, 0.0
          %vm215 = vcmask 261120
          %216 = vst.msk [vmem:[#allocation4] sm:$0xff] %vm215, 0.0
        $region40: #{tpu_custom_call.1} parent=27 // pred_fallthru
          _
        %v217 = vld [vmem:[#allocation5] sm:$0xff]
        %v218 = vld [vmem:[%s186] sm:$0xff]
        %v219 = vld [vmem:[%s186 + $0x8] sm:$0xff]
        %vm220 = vcmask 261120
        %v222 = vsel %vm220, %v217, 0
        %v225 = vsel %vm220, %v218, 0
        %v228 = vsel %vm220, %v219, 0
        %230 = vmatprep.subr.mxu0 0.0
        %231 = vmatpush1.xpose.msra.mxu0 %v225
        %232 = vmatprep.subr.mxu0 0.0
        %233 = vmatpush1.xpose.msra.mxu0 %v228
        %234 = vmatprep.subr.mxu0 0.0
        %235 = vmatpush1.xpose.msra.mxu0 0.0
        %236 = vmatprep.subr.mxu0 0.0
        %237 = vmatpush1.xpose.msra.mxu0 0.0
        %238 = vmatprep.subr.mxu0 0.0
        %239 = vmatpush1.xpose.msra.mxu0 0.0
        %240 = vmatprep.subr.mxu0 0.0
        %241 = vmatpush1.xpose.msra.mxu0 0.0
        %242 = vmatprep.subr.mxu0 0.0
        %243 = vmatpush1.xpose.msra.mxu0 0.0
        %244 = vmatprep.subr.mxu0 0.0
        %245 = vmatpush1.xpose.msra.mxu0 0.0
        %246 = vmatprep.subr.mxu0 0.0
        %247 = vmatpush1.xpose.msra.mxu0 0.0
        %248 = vmatprep.subr.mxu0 0.0
        %249 = vmatpush1.xpose.msra.mxu0 0.0
        %250 = vmatprep.subr.mxu0 0.0
        %251 = vmatpush1.xpose.msra.mxu0 0.0
        %252 = vmatprep.subr.mxu0 0.0
        %253 = vmatpush1.xpose.msra.mxu0 0.0
        %254 = vmatprep.subr.mxu0 0.0
        %255 = vmatpush1.xpose.msra.mxu0 0.0
        %256 = vmatprep.subr.mxu0 0.0
        %257 = vmatpush1.xpose.msra.mxu0 0.0
        %258 = vmatprep.subr.mxu0 0.0
        %259 = vmatpush1.xpose.msra.mxu0 0.0
        %260 = vmatprep.subr.mxu0 0.0
        %261 = vmatpush1.xpose.msra.mxu0 0.0
        %262 = vmatprep.subr.mxu0 0.0
        %263 = vmatpush1.xpose.msra.mxu0 0.0
        %264 = vmatprep.subr.mxu0 0.0
        %265 = vmatpush1.xpose.msra.mxu0 0.0
        %266 = vmatprep.subr.mxu0 0.0
        %267 = vmatpush1.xpose.msra.mxu0 0.0
        %268 = vmatprep.subr.mxu0 0.0
        %269 = vmatpush1.xpose.msra.mxu0 0.0
        %270 = vmatprep.subr.mxu0 0.0
        %271 = vmatpush1.xpose.msra.mxu0 0.0
        %272 = vmatprep.subr.mxu0 0.0
        %273 = vmatpush1.xpose.msra.mxu0 0.0
        %274 = vmatprep.subr.mxu0 0.0
        %275 = vmatpush1.xpose.msra.mxu0 0.0
        %276 = vmatprep.subr.mxu0 0.0
        %277 = vmatpush1.xpose.msra.mxu0 0.0
        %278 = vmatprep.subr.mxu0 0.0
        %279 = vmatpush1.xpose.msra.mxu0 0.0
        %280 = vmatprep.subr.mxu0 0.0
        %281 = vmatpush1.xpose.msra.mxu0 0.0
        %282 = vmatprep.subr.mxu0 0.0
        %283 = vmatpush1.xpose.msra.mxu0 0.0
        %284 = vmatprep.subr.mxu0 0.0
        %285 = vmatpush1.xpose.msra.mxu0 0.0
        %286 = vmatprep.subr.mxu0 0.0
        %287 = vmatpush1.xpose.msra.mxu0 0.0
        %288 = vmatprep.subr.mxu0 0.0
        %289 = vmatpush1.xpose.msra.mxu0 0.0
        %290 = vmatprep.subr.mxu0 0.0
        %291 = vmatpush1.xpose.msra.mxu0 0.0
        %292 = vmatprep.subr.mxu0 0.0
        %293 = vmatpush1.xpose.msra.mxu0 0.0
        %294 = vmatprep.mubr.f32.mxu0 0.0
        %295 = vmatmul.mubr.f32.gmra.mrb[0].mxu0 %v222
        %v296 = vpop.f32.mrb[0].mxu0
        %v297 = vadd.f32 0.0, %v296
        %v298 = vpop.f32.mrb[0].mxu0
        %299 = vdwg.mxu0
        %v300 = vld [vmem:[#allocation2] sm:$0xff]
        %vm301 = vcmask 130048
        %v302 = vsel %vm301, %v297, -inf
        %303 = vmax.xlane.f32.xlu0 %v302
        %v304 = vpop.xlane.xlu0 %303
        %v305 = vmax.f32 %v300, %v304
        %v306 = vsub.f32 %v300, %v305
        %v307 = vmul.f32 %v306, 1.442695
        %v308 = vpow.pop %v307
        %310 = vset.pattern.permute.xlu0 0
        %311 = vperm.xlu0 %310, %v305
        %v312 = vpop.permute.xlu0 %311
        %v314 = vsub.f32 %v297, %v312
        %v315 = vmul.f32 %v314, 1.442695
        %v316 = vpow.pop %v315
        %v317 = vld [vmem:[#allocation3] sm:$0xff]
        %v318 = vmul.f32 %v308, %v317
        %v319 = vsel %vm301, %v316, 0.0
        %320 = vadd.xlane.f32.xlu0 %v319
        %v321 = vpop.xlane.xlu0 %320
        %v322 = vadd.f32 %v318, %v321
        %vm323 = vcmask 7168
        %324 = vst.msk [vmem:[#allocation3] sm:$0xff] %vm323, %v322
        %v325 = vld [vmem:[#allocation4] sm:$0xff]
        %327 = vset.pattern.permute.xlu0 0
        %328 = vperm.xlu0 %327, %v308
        %v329 = vpop.permute.xlu0 %328
        %v331 = vmul.f32 %v329, %v325
        %v333 = vsel %vm301, %v316, 0
        %335 = vmatprep.subr.mxu0 0.0
        %336 = vmatpush1.msra.mxu0 %v218
        %337 = vmatprep.subr.mxu0 0.0
        %338 = vmatpush1.msra.mxu0 %v219
        %339 = vmatprep.subr.mxu0 0.0
        %340 = vmatpush1.msra.mxu0 0.0
        %341 = vmatprep.subr.mxu0 0.0
        %342 = vmatpush1.msra.mxu0 0.0
        %343 = vmatprep.subr.mxu0 0.0
        %344 = vmatpush1.msra.mxu0 0.0
        %345 = vmatprep.subr.mxu0 0.0
        %346 = vmatpush1.msra.mxu0 0.0
        %347 = vmatprep.subr.mxu0 0.0
        %348 = vmatpush1.msra.mxu0 0.0
        %349 = vmatprep.subr.mxu0 0.0
        %350 = vmatpush1.msra.mxu0 0.0
        %351 = vmatprep.subr.mxu0 0.0
        %352 = vmatpush1.msra.mxu0 0.0
        %353 = vmatprep.subr.mxu0 0.0
        %354 = vmatpush1.msra.mxu0 0.0
        %355 = vmatprep.subr.mxu0 0.0
        %356 = vmatpush1.msra.mxu0 0.0
        %357 = vmatprep.subr.mxu0 0.0
        %358 = vmatpush1.msra.mxu0 0.0
        %359 = vmatprep.subr.mxu0 0.0
        %360 = vmatpush1.msra.mxu0 0.0
        %361 = vmatprep.subr.mxu0 0.0
        %362 = vmatpush1.msra.mxu0 0.0
        %363 = vmatprep.subr.mxu0 0.0
        %364 = vmatpush1.msra.mxu0 0.0
        %365 = vmatprep.subr.mxu0 0.0
        %366 = vmatpush1.msra.mxu0 0.0
        %367 = vmatprep.subr.mxu0 0.0
        %368 = vmatpush1.msra.mxu0 0.0
        %369 = vmatprep.subr.mxu0 0.0
        %370 = vmatpush1.msra.mxu0 0.0
        %371 = vmatprep.subr.mxu0 0.0
        %372 = vmatpush1.msra.mxu0 0.0
        %373 = vmatprep.subr.mxu0 0.0
        %374 = vmatpush1.msra.mxu0 0.0
        %375 = vmatprep.subr.mxu0 0.0
        %376 = vmatpush1.msra.mxu0 0.0
        %377 = vmatprep.subr.mxu0 0.0
        %378 = vmatpush1.msra.mxu0 0.0
        %379 = vmatprep.subr.mxu0 0.0
        %380 = vmatpush1.msra.mxu0 0.0
        %381 = vmatprep.subr.mxu0 0.0
        %382 = vmatpush1.msra.mxu0 0.0
        %383 = vmatprep.subr.mxu0 0.0
        %384 = vmatpush1.msra.mxu0 0.0
        %385 = vmatprep.subr.mxu0 0.0
        %386 = vmatpush1.msra.mxu0 0.0
        %387 = vmatprep.subr.mxu0 0.0
        %388 = vmatpush1.msra.mxu0 0.0
        %389 = vmatprep.subr.mxu0 0.0
        %390 = vmatpush1.msra.mxu0 0.0
        %391 = vmatprep.subr.mxu0 0.0
        %392 = vmatpush1.msra.mxu0 0.0
        %393 = vmatprep.subr.mxu0 0.0
        %394 = vmatpush1.msra.mxu0 0.0
        %395 = vmatprep.subr.mxu0 0.0
        %396 = vmatpush1.msra.mxu0 0.0
        %397 = vmatprep.subr.mxu0 0.0
        %398 = vmatpush1.msra.mxu0 0.0
        %399 = vmatprep.mubr.f32.mxu0 0.0
        %400 = vmatmul.mubr.f32.gmra.mrb[0].mxu0 %v333
        %v401 = vpop.f32.mrb[0].mxu0
        %v402 = vadd.f32 0.0, %v401
        %v403 = vpop.f32.mrb[0].mxu0
        %404 = vdwg.mxu0
        %v405 = vadd.f32 %v331, %v402
        %406 = vst.msk [vmem:[#allocation4] sm:$0xff] %vm220, %v405
        %407 = vst.msk [vmem:[#allocation2] sm:$0xff] %vm323, %v305
        // Predicated region
        $region41: #{tpu_custom_call.1} parent=27 // pred_check
          %p408 = pneg %p208
        $region42: #{tpu_custom_call.1} parent=27 // pred_check_branch
          %410 = sbr.rel (%p408) target = $region44
        $region43: #{tpu_custom_call.1} parent=27 // pred_region
          %v411 = vld [vmem:[#allocation4] sm:$0xff]
          %v412 = vld [vmem:[#allocation3] sm:$0xff]
          %414 = vset.pattern.permute.xlu0 0
          %415 = vperm.xlu0 %414, %v412
          %v416 = vpop.permute.xlu0 %415
          %v418 = vrcp.pop %v416
          %v419 = vmul.f32 %v411, %v418
          %420 = vst.msk [vmem:[%s206] sm:$0xff] %vm220, %v419
        $region44: #{tpu_custom_call.1} parent=27 // pred_fallthru
          _
        %s421 = sand.u32 %s103, 1
        %s422 = scalar_lea.sflag [#allocation7], %s421
        %s423 = sand.u32 %s103, 1
        %s424 = smul.addr %s423, 8
        %s425 = scalar_lea.vmem [#allocation10], %s424
        // Predicated region
        $region45: #{tpu_custom_call.1} parent=27 // pred_check
          %p426 = pneg %p113
        $region46: #{tpu_custom_call.1} parent=27 // pred_check_branch
          %428 = sbr.rel (%p426) target = $region48
        $region47: #{tpu_custom_call.1} parent=27 // pred_region
          %s430 = ssub.s32 128, 128
          %431 = vsyncadd %s422, %s430
          %s432 = sadd.s32 %s26, %s25
          %s433 = smul.addr %s432, 128
          %s434 = scalar_lea.hbm %s2, %s433
          %s436 = sshll.u32 %s425, 4
          %s437 = int_to_ptr.vmem [resolvable:$true] %s436
          %439 = dma.vmem_to_hbm [thread:$0]  %s437, 128, %s434, %s422
        $region48: #{tpu_custom_call.1} parent=27 // pred_fallthru
          _
      $region28: #{tpu_custom_call.1} parent=5 // pred_fallthru
        _
      %p440 = scmp.le.s32.totalorder 2, %s15
      // Predicated region
      $region49: #{tpu_custom_call.1} parent=5 // pred_check
        %p441 = pneg %p440
      $region50: #{tpu_custom_call.1} parent=5 // pred_check_branch
        %443 = sbr.rel (%p441) target = $region52
      $region51: #{tpu_custom_call.1} parent=5 // pred_region
        %s444 = ssub.s32 %s15, 2
        // Predicated region
        $region53: #{tpu_custom_call.1} parent=51 // pred_check
          %p445 = pneg %p119
        $region54: #{tpu_custom_call.1} parent=51 // pred_check_branch
          %447 = sbr.rel (%p445) target = $region56
        $region55: #{tpu_custom_call.1} parent=51 // pred_region
          %s448 = sand.u32 %s104, 1
          %s449 = scalar_lea.sflag [#allocation7], %s448
          %s450 = sand.u32 %s104, 1
          %s451 = smul.addr %s450, 8
          %s452 = scalar_lea.vmem [#allocation10], %s451
          %453 = dma.done %s449, 128
        $region56: #{tpu_custom_call.1} parent=51 // pred_fallthru
          _
      $region52: #{tpu_custom_call.1} parent=5 // pred_fallthru
        _
    $region6: #{tpu_custom_call.1} parent=1 // loop_footer
      %s19 = sadd.s32 1, %s15
    $region7: #{tpu_custom_call.1} parent=1 // loop_footer_branch
      %14 = sbr.rel target = $region3
    $region8: #{tpu_custom_call.1} parent=1 // loop_exit
      _
    %454 = vsyncpa [#allocation6], 1
    %s455 = scalar_lea.sflag [#allocation6], 1
    %456 = vsyncpa %s455, 1
    %457 = vsyncpa [#allocation9], 1
    %s458 = scalar_lea.sflag [#allocation9], 1
    %459 = vsyncpa %s458, 1
    %460 = vsyncpa [#allocation7], 1
    %s461 = scalar_lea.sflag [#allocation7], 1
    %462 = vsyncpa %s461, 1

</llo_original>
